<compile_context>
chip_gen: v7x
topology: tpu7x:2x2x1
jax: 0.10.0
libtpu: 0.0.40
codegen_flags: <defaults>
</compile_context>

<pallas_src>
import functools

import jax
import jax.numpy as jnp
from jax import lax
from jax.experimental import pallas as pl
from jax.experimental.pallas import tpu as pltpu


def _round_up(x, m):
    return ((x + m - 1) // m) * m


def _stable_sigmoid(z):
    # exp(-|z|) is always in (0, 1] -> no overflow; exact divide keeps full accuracy.
    # (Only O*TB elements pass through here; compute is far off the DMA-bound critical path.)
    e = jnp.exp(-jnp.abs(z))
    num = jnp.where(z >= 0, 1.0, e)
    return num / (1.0 + e)


def _decision_kernel(x_ref, w_ref, b_ref, o_ref, *, out_batch_major, precision):
    if out_batch_major:
        # x: [TB, F], w: [O, F] (native nn.Linear layout) -> z: [TB, O]
        # Output written batch-major: no wrapper transpose / extra HBM pass for O > 1.
        z = lax.dot_general(
            x_ref[...], w_ref[...],
            dimension_numbers=(((1,), (1,)), ((), ())),   # contract F of both operands
            preferred_element_type=jnp.float32,
            precision=precision,
        )
        z = z + b_ref[...]        # [1, O] bias broadcast over batch rows
    else:
        # O == 1: compute [O, TB] so the batch dim sits on the 128-lane axis (unmasked vst).
        z = lax.dot_general(
            w_ref[...], x_ref[...],
            dimension_numbers=(((1,), (1,)), ((), ())),
            preferred_element_type=jnp.float32,
            precision=precision,
        )
        z = z + b_ref[0]          # scalar bias from SMEM
    o_ref[...] = _stable_sigmoid(z).astype(o_ref.dtype)


def _vmem_budget():
    """Generation-aware VMEM budget (~48 MiB on v7x's 64 MiB, ~96 MiB on v5e/v6e's 128 MiB)."""
    try:
        cap = int(pltpu.get_tpu_info().vmem_capacity_bytes)
    except Exception:
        cap = 64 << 20  # conservative fallback (v7x physical VMEM)
    return int(cap * 0.75)


def _pick_batch_tile(Bp, Fp, Op, out_batch_major):
    """Largest lane-aligned batch tile fitting the budget, keeping >= 4 grid steps for megacore."""
    budget = _vmem_budget()
    f_pad = _round_up(Fp, 128)
    o_sub = _round_up(Op, 8)

    def need(tb):
        x_t = 2 * _round_up(tb, 8) * f_pad * 4                      # x tile, double-buffered
        if out_batch_major:
            o_t = 2 * _round_up(tb, 8) * _round_up(Op, 128) * 4     # [tb, O] out tile
        else:
            o_t = 2 * o_sub * _round_up(tb, 128) * 4                # [O, tb] out tile
        w_t = 2 * o_sub * f_pad * 4          # conservative: constant-index block counted x2
        b_t = 2 * 8 * 128 * 4                # bias tile (worst case padded)
        return x_t + o_t + w_t + b_t

    if Bp <= 128:
        return Bp, need(Bp), budget

    bytes_per_row = f_pad * 4
    tb_dma = max(128, ((8 << 20) // bytes_per_row) // 128 * 128)    # ~8 MiB x-tile per buffer
    tb_par = _round_up(-(-Bp // 4), 128)                            # keep >= 4 grid steps
    tb = max(128, min(tb_dma, tb_par))
    while tb > 128 and need(tb) > budget:                           # shrink in lane-legal steps
        tb -= 128
    return tb, need(tb), budget


def decision_node_forward(x, weight, bias, precision=None):
    """
    Eval-mode forward of decison_node: sigmoid(x @ weight.T + bias)  (Dropout is identity).
    x:      [B, F]  float32
    weight: [O, F]  native PyTorch nn.Linear layout (NOT transposed)
    bias:   [O]
    precision: pass jax.lax.Precision.HIGHEST for bit-closer parity with PyTorch f32 Linear.
    returns [B, O]
    """
    B, F = x.shape
    O, F2 = weight.shape
    assert F == F2 and bias.shape == (O,)

    # Lane packing for small feature dims: fold k batch rows into one VMEM row so the
    # 128-lane axis is densely used (full-width DMAs, 4x effective batch tile for F=32).
    k = 1
    if F < 128:
        for cand in range(128 // F, 1, -1):
            if B % cand == 0:
                k = cand
                break

    if k > 1:
        Bp, Fp, Op = B // k, k * F, k * O
        x_in = x.reshape(Bp, Fp)                                   # contiguous -> free reshape
        w_in = jnp.kron(jnp.eye(k, dtype=weight.dtype), weight)    # [k*O, k*F] block-diagonal
        b_vec = jnp.tile(bias, k)
    else:
        Bp, Fp, Op = B, F, O
        x_in, w_in, b_vec = x, weight, bias

    out_batch_major = Op != 1     # keep the lane-dense [1, B] trick only for unpacked O == 1
    tb, need, budget = _pick_batch_tile(Bp, Fp, Op, out_batch_major)
    grid = (pl.cdiv(Bp, tb),)

    if out_batch_major:
        b_arg = b_vec.reshape(1, Op).astype(jnp.float32)
        b_spec = pl.BlockSpec((1, Op), lambda i: (0, 0))           # resident VMEM block
        out_shape = jax.ShapeDtypeStruct((Bp, Op), jnp.float32)
        out_spec = pl.BlockSpec((tb, Op), lambda i: (i, 0))        # direct [B, O], no transpose
    else:
        b_arg = b_vec.reshape(1).astype(jnp.float32)
        b_spec = pl.BlockSpec(memory_space=pltpu.SMEM)             # scalar bias in SMEM
        out_shape = jax.ShapeDtypeStruct((Op, Bp), jnp.float32)
        out_spec = pl.BlockSpec((Op, tb), lambda i: (0, i))        # batch on lanes (dense vst)

    kernel = functools.partial(
        _decision_kernel, out_batch_major=out_batch_major, precision=precision)

    # Explicit scoped-VMEM limit: >= need, well below physical VMEM on every generation.
    vmem_limit = int(min(max(need + (4 << 20), 32 << 20),
                         max(budget + (8 << 20), need + (4 << 20))))

    out = pl.pallas_call(
        kernel,
        out_shape=out_shape,
        grid=grid,
        in_specs=[
            pl.BlockSpec((tb, Fp), lambda i: (i, 0)),   # x: streamed over batch (double-buffered)
            pl.BlockSpec((Op, Fp), lambda i: (0, 0)),   # weight: resident, native layout
            b_spec,
        ],
        out_specs=out_spec,
        compiler_params=pltpu.CompilerParams(
            dimension_semantics=("parallel",),          # shards batch grid across 2 TCs on v7x
            vmem_limit_bytes=vmem_limit,
        ),
        cost_estimate=pl.CostEstimate(
            flops=int(2 * B * F * O),
            transcendentals=int(B * O),
            bytes_accessed=int(4 * (B * F + B * O + O * F)),
        ),
    )(x_in, w_in, b_arg)

    if out_batch_major:
        return out.reshape(B, O)       # packed [B/k, k*O] (or [B, O]) -> [B, O]
    return out.T                       # [1, B] -> [B, 1]; degenerate-dim transpose (free)


if __name__ == "__main__":
    key = jax.random.PRNGKey(0)
    keys = jax.random.split(key, 9)

    # Case 1: module-default decision node (output_size=1) at a small shape.
    # F=32 < 128 exercises the lane-packing path (k=4 -> dense 128-lane x rows).
    B1, F1, O1 = 8, 32, 1
    bound1 = 1.0 / (F1 ** 0.5)
    x1 = jax.random.normal(keys[0], (B1, F1), dtype=jnp.float32)
    w1 = jax.random.uniform(keys[1], (O1, F1), minval=-bound1, maxval=bound1, dtype=jnp.float32)
    b1 = jax.random.uniform(keys[2], (O1,), minval=-bound1, maxval=bound1, dtype=jnp.float32)
    out1 = jax.block_until_ready(decision_node_forward(x1, w1, b1))
    ref1 = jax.nn.sigmoid(x1 @ w1.T + b1)
    assert out1.shape == (B1, O1)
    assert jnp.allclose(out1, ref1, atol=2e-5, rtol=2e-5)

    # Case 2: larger batch, O>1 -> batch tiling (grid=4, parallel) + direct [B, O] output.
    B2, F2, O2 = 1024, 256, 3
    bound2 = 1.0 / (F2 ** 0.5)
    x2 = jax.random.normal(keys[3], (B2, F2), dtype=jnp.float32)
    w2 = jax.random.uniform(keys[4], (O2, F2), minval=-bound2, maxval=bound2, dtype=jnp.float32)
    b2 = jax.random.uniform(keys[5], (O2,), minval=-bound2, maxval=bound2, dtype=jnp.float32)
    out2 = jax.block_until_ready(decision_node_forward(x2, w2, b2))
    ref2 = jax.nn.sigmoid(x2 @ w2.T + b2)
    assert out2.shape == (B2, O2)
    # slightly looser: MXU accumulation order differs from the XLA reference matmul
    assert jnp.allclose(out2, ref2, atol=1e-4, rtol=1e-4)

    # Case 3: O==1 with F>=128 and an odd batch -> lane-dense [1, B] path + SMEM scalar bias.
    B3, F3, O3 = 100, 128, 1
    bound3 = 1.0 / (F3 ** 0.5)
    x3 = jax.random.normal(keys[6], (B3, F3), dtype=jnp.float32)
    w3 = jax.random.uniform(keys[7], (O3, F3), minval=-bound3, maxval=bound3, dtype=jnp.float32)
    b3 = jax.random.uniform(keys[8], (O3,), minval=-bound3, maxval=bound3, dtype=jnp.float32)
    out3 = jax.block_until_ready(decision_node_forward(x3, w3, b3))
    ref3 = jax.nn.sigmoid(x3 @ w3.T + b3)
    assert out3.shape == (B3, O3)
    assert jnp.allclose(out3, ref3, atol=1e-4, rtol=1e-4)

    print("KERNEL_OK")
</pallas_src>

<mosaic_0001>
module attributes {stable_mosaic.version = 11 : i64} {
  func.func @_decision_kernel(%arg0: i32, %arg1: memref<2x128xf32, #tpu.memory_space<vmem>>, %arg2: memref<4x128xf32, #tpu.memory_space<vmem>>, %arg3: memref<1x4xf32, #tpu.memory_space<vmem>>, %arg4: memref<2x4xf32, #tpu.memory_space<vmem>>) attributes {dimension_semantics = [#tpu.dimension_semantics<parallel>], iteration_bounds = array<i64: 1>, scalar_prefetch = 0 : i64, scratch_operands = 0 : i64, tpu.core_type = #tpu.core_type<tc>, window_params = [{transform_indices = @transform_0, window_bounds = array<i64: 2, 128>}, {pipeline_mode = #tpu.pipeline_mode<synchronous>, transform_indices = @transform_1, window_bounds = array<i64: 4, 128>}, {pipeline_mode = #tpu.pipeline_mode<synchronous>, transform_indices = @transform_2, window_bounds = array<i64: 1, 4>}, {transform_indices = @transform_3, window_bounds = array<i64: 2, 4>}]} {
    %c0 = arith.constant 0 : index
    %c0_0 = arith.constant 0 : index
    %0 = vector.load %arg1[%c0, %c0_0] : memref<2x128xf32, #tpu.memory_space<vmem>>, vector<2x128xf32>
    %c0_1 = arith.constant 0 : index
    %c0_2 = arith.constant 0 : index
    %1 = vector.load %arg2[%c0_1, %c0_2] : memref<4x128xf32, #tpu.memory_space<vmem>>, vector<4x128xf32>
    %cst = arith.constant dense<0.000000e+00> : vector<2x4xf32>
    %2 = tpu.matmul %0, %1, %cst {dimension_numbers = #tpu.dot_dimension_numbers<[1], [1], [0], [0], [0, 0, 1, 0], [], []>} : vector<2x128xf32>, vector<4x128xf32>, vector<2x4xf32> -> vector<2x4xf32>
    %c0_3 = arith.constant 0 : index
    %c0_4 = arith.constant 0 : index
    %3 = vector.load %arg3[%c0_3, %c0_4] : memref<1x4xf32, #tpu.memory_space<vmem>>, vector<1x4xf32>
    %4 = vector.broadcast %3 : vector<1x4xf32> to vector<2x4xf32>
    %5 = arith.addf %2, %4 : vector<2x4xf32>
    %6 = math.absf %5 : vector<2x4xf32>
    %cst_5 = arith.constant 0.000000e+00 : f32
    %7 = vector.broadcast %cst_5 : f32 to vector<2x4xf32>
    %8 = arith.subf %7, %6 : vector<2x4xf32>
    %9 = math.exp %8 : vector<2x4xf32>
    %cst_6 = arith.constant 0.000000e+00 : f32
    %10 = vector.broadcast %cst_6 : f32 to vector<2x4xf32>
    %11 = arith.cmpf oge, %5, %10 : vector<2x4xf32>
    %cst_7 = arith.constant 1.000000e+00 : f32
    %12 = vector.broadcast %cst_7 : f32 to vector<2x4xf32>
    %13 = arith.select %11, %12, %9 : vector<2x4xi1>, vector<2x4xf32>
    %cst_8 = arith.constant 1.000000e+00 : f32
    %14 = vector.broadcast %cst_8 : f32 to vector<2x4xf32>
    %15 = arith.addf %14, %9 : vector<2x4xf32>
    %16 = arith.divf %13, %15 : vector<2x4xf32>
    %c0_9 = arith.constant 0 : index
    %c0_10 = arith.constant 0 : index
    %17 = vector.load %arg4[%c0_9, %c0_10] : memref<2x4xf32, #tpu.memory_space<vmem>>, vector<2x4xf32>
    tpu.vector_store %arg4[%c0_9, %c0_10], %16 {strides = array<i32>} : memref<2x4xf32, #tpu.memory_space<vmem>>, vector<2x4xf32>,
    return
  }
  func.func @transform_0(%arg0: i32) -> (i32, i32) {
    %c0_i32 = arith.constant 0 : i32
    %c0_i32_0 = arith.constant 0 : i32
    return %arg0, %c0_i32 : i32, i32
  }
  func.func @transform_1(%arg0: i32) -> (i32, i32) {
    %c0_i32 = arith.constant 0 : i32
    %c0_i32_0 = arith.constant 0 : i32
    %c0_i32_1 = arith.constant 0 : i32
    return %c0_i32, %c0_i32_0 : i32, i32
  }
  func.func @transform_2(%arg0: i32) -> (i32, i32) {
    %c0_i32 = arith.constant 0 : i32
    %c0_i32_0 = arith.constant 0 : i32
    %c0_i32_1 = arith.constant 0 : i32
    return %c0_i32, %c0_i32_0 : i32, i32
  }
  func.func @transform_3(%arg0: i32) -> (i32, i32) {
    %c0_i32 = arith.constant 0 : i32
    %c0_i32_0 = arith.constant 0 : i32
    return %arg0, %c0_i32 : i32, i32
  }
}

</mosaic_0001>

<llo_original>
// kernel: tpu_custom_call.1
$region0: #{tpu_custom_call.1}
  #allocation0 [shape = 'u32[]', space=smem, size = 0x4, offset = 0x4, fixed_abs, tag = 'smem constant byte address 0x4 - core index']
  #allocation1 [shape = 'u32[144,128]{1,0:T(1,128)}', space=vmem, size = 0x12000, scoped, tag = 'internal scratch']
  %s0 = inlined_call_operand.hbm [shape: f32[2,128], index: 0, kind: input, shape index: {}]
  %s1 = inlined_call_operand.hbm [shape: f32[4,128], index: 1, kind: input, shape index: {}]
  %s2 = inlined_call_operand.vmem [shape: f32[1,4], index: 2, kind: input, shape index: {}]
  %s3 = inlined_call_operand.hbm [shape: f32[2,4], index: 3, kind: output, shape index: {}]
  %s4 = sld [smem:[#allocation0]]
  $region30: #{tpu_custom_call.1} parent=0
    _
  %s6 = ssub.s32 1, %s4
  %s7 = scalar_select 0, %s6, %s4
  $region1: #{tpu_custom_call.1} parent=0
    #allocation2 [shape = 'u8[1024]{0}', space=vmem, size = 0x400, scoped, tag = 'input window, operand 0, single buffered']
    #allocation3 [shape = 's32[1]{0}', space=sflag, size = 0x4, scoped, tag = 'scoped memory for tpu_custom_call.1']
    #allocation4 [shape = 's32[1]{0}', space=sflag, size = 0x4, scoped, tag = 'scoped memory for tpu_custom_call.1']
    #allocation5 [shape = 'u8[2048]{0}', space=vmem, size = 0x800, scoped, tag = 'input window, operand 1, single buffered']
    #allocation6 [shape = 's32[1]{0}', space=sflag, size = 0x4, scoped, tag = 'scoped memory for tpu_custom_call.1']
    #allocation7 [shape = 'u8[1024]{0}', space=vmem, size = 0x400, scoped, tag = 'output window, operand 0, single buffered']
    %8 = vsyncpa [#allocation3], 0
    %9 = vsyncpa [#allocation6], 0
    %10 = vsyncpa [#allocation4], 0
    // Predicated region
    $region2: #{tpu_custom_call.1} parent=1 // pred_check
      _
    $region3: #{tpu_custom_call.1} parent=1 // pred_check_branch
      %12 = sbr.rel (0) target = $region5
    $region4: #{tpu_custom_call.1} parent=1 // pred_region
      %s14 = ssub.s32 32, 32
      %15 = vsyncadd [#allocation3], %s14
      %s17 = sshll.u32 [#allocation2], 4
      %s18 = int_to_ptr.vmem [resolvable:$true] %s17
      %20 = dma.hbm_to_vmem [thread:$0]  %s0, 32, %s18, [#allocation3]
    $region5: #{tpu_custom_call.1} parent=1 // pred_fallthru
      _
    // Predicated region
    $region6: #{tpu_custom_call.1} parent=1 // pred_check
      _
    $region7: #{tpu_custom_call.1} parent=1 // pred_check_branch
      %22 = sbr.rel (0) target = $region9
    $region8: #{tpu_custom_call.1} parent=1 // pred_region
      %s24 = ssub.s32 64, 64
      %25 = vsyncadd [#allocation6], %s24
      %s27 = sshll.u32 [#allocation5], 4
      %s28 = int_to_ptr.vmem [resolvable:$true] %s27
      %30 = dma.hbm_to_vmem [thread:$0]  %s1, 64, %s28, [#allocation6]
    $region9: #{tpu_custom_call.1} parent=1 // pred_fallthru
      _
    // Predicated region
    $region10: #{tpu_custom_call.1} parent=1 // pred_check
      _
    $region11: #{tpu_custom_call.1} parent=1 // pred_check_branch
      %32 = sbr.rel (0) target = $region13
    $region12: #{tpu_custom_call.1} parent=1 // pred_region
      _
    $region13: #{tpu_custom_call.1} parent=1 // pred_fallthru
      _
    // Predicated region
    $region14: #{tpu_custom_call.1} parent=1 // pred_check
      _
    $region15: #{tpu_custom_call.1} parent=1 // pred_check_branch
      %34 = sbr.rel (0) target = $region17
    $region16: #{tpu_custom_call.1} parent=1 // pred_region
      %35 = dma.done [#allocation3], 32
    $region17: #{tpu_custom_call.1} parent=1 // pred_fallthru
      _
    // Predicated region
    $region18: #{tpu_custom_call.1} parent=1 // pred_check
      _
    $region19: #{tpu_custom_call.1} parent=1 // pred_check_branch
      %37 = sbr.rel (0) target = $region21
    $region20: #{tpu_custom_call.1} parent=1 // pred_region
      %38 = dma.done [#allocation6], 64
    $region21: #{tpu_custom_call.1} parent=1 // pred_fallthru
      _
    %v39 = vld [vmem:[#allocation2] sm:$0x3]
    %v40 = vld [vmem:[#allocation5] sm:$0xf]
    %v41 = vld [vmem:[%s2] sm:$0x1]
    %v43 = vlaneseq
    %v44 = vshrl.u32 %v43, 7
    %v45 = vsub.s32 0, %v44
    %v46 = vrot.slane %v41, %v45
    %48 = vmatprep.subr.mxu0 0.0
    %49 = vmatpush1.xpose.msra.mxu0 %v40
    %50 = vmatprep.subr.mxu0 0.0
    %51 = vmatpush1.xpose.msra.mxu0 0.0
    %52 = vmatprep.subr.mxu0 0.0
    %53 = vmatpush1.xpose.msra.mxu0 0.0
    %54 = vmatprep.subr.mxu0 0.0
    %55 = vmatpush1.xpose.msra.mxu0 0.0
    %56 = vmatprep.subr.mxu0 0.0
    %57 = vmatpush1.xpose.msra.mxu0 0.0
    %58 = vmatprep.subr.mxu0 0.0
    %59 = vmatpush1.xpose.msra.mxu0 0.0
    %60 = vmatprep.subr.mxu0 0.0
    %61 = vmatpush1.xpose.msra.mxu0 0.0
    %62 = vmatprep.subr.mxu0 0.0
    %63 = vmatpush1.xpose.msra.mxu0 0.0
    %64 = vmatprep.subr.mxu0 0.0
    %65 = vmatpush1.xpose.msra.mxu0 0.0
    %66 = vmatprep.subr.mxu0 0.0
    %67 = vmatpush1.xpose.msra.mxu0 0.0
    %68 = vmatprep.subr.mxu0 0.0
    %69 = vmatpush1.xpose.msra.mxu0 0.0
    %70 = vmatprep.subr.mxu0 0.0
    %71 = vmatpush1.xpose.msra.mxu0 0.0
    %72 = vmatprep.subr.mxu0 0.0
    %73 = vmatpush1.xpose.msra.mxu0 0.0
    %74 = vmatprep.subr.mxu0 0.0
    %75 = vmatpush1.xpose.msra.mxu0 0.0
    %76 = vmatprep.subr.mxu0 0.0
    %77 = vmatpush1.xpose.msra.mxu0 0.0
    %78 = vmatprep.subr.mxu0 0.0
    %79 = vmatpush1.xpose.msra.mxu0 0.0
    %80 = vmatprep.subr.mxu0 0.0
    %81 = vmatpush1.xpose.msra.mxu0 0.0
    %82 = vmatprep.subr.mxu0 0.0
    %83 = vmatpush1.xpose.msra.mxu0 0.0
    %84 = vmatprep.subr.mxu0 0.0
    %85 = vmatpush1.xpose.msra.mxu0 0.0
    %86 = vmatprep.subr.mxu0 0.0
    %87 = vmatpush1.xpose.msra.mxu0 0.0
    %88 = vmatprep.subr.mxu0 0.0
    %89 = vmatpush1.xpose.msra.mxu0 0.0
    %90 = vmatprep.subr.mxu0 0.0
    %91 = vmatpush1.xpose.msra.mxu0 0.0
    %92 = vmatprep.subr.mxu0 0.0
    %93 = vmatpush1.xpose.msra.mxu0 0.0
    %94 = vmatprep.subr.mxu0 0.0
    %95 = vmatpush1.xpose.msra.mxu0 0.0
    %96 = vmatprep.subr.mxu0 0.0
    %97 = vmatpush1.xpose.msra.mxu0 0.0
    %98 = vmatprep.subr.mxu0 0.0
    %99 = vmatpush1.xpose.msra.mxu0 0.0
    %100 = vmatprep.subr.mxu0 0.0
    %101 = vmatpush1.xpose.msra.mxu0 0.0
    %102 = vmatprep.subr.mxu0 0.0
    %103 = vmatpush1.xpose.msra.mxu0 0.0
    %104 = vmatprep.subr.mxu0 0.0
    %105 = vmatpush1.xpose.msra.mxu0 0.0
    %106 = vmatprep.subr.mxu0 0.0
    %107 = vmatpush1.xpose.msra.mxu0 0.0
    %108 = vmatprep.subr.mxu0 0.0
    %109 = vmatpush1.xpose.msra.mxu0 0.0
    %110 = vmatprep.subr.mxu0 0.0
    %111 = vmatpush1.xpose.msra.mxu0 0.0
    %112 = vmatprep.mubr.f32.mxu0 0.0
    %113 = vmatmul.mubr.f32.gmra.mrb[0].mxu0 %v39
    %v114 = vpop.f32.mrb[0].mxu0
    %v115 = vadd.f32 %v46, %v114
    %v116 = vpop.f32.mrb[0].mxu0
    %117 = vdwg.mxu0
    %v118 = vand.u32 2147483647, %v115
    %v119 = vsub.f32 0.0, %v118
    %v120 = vmul.f32 %v119, 1.442695
    %v121 = vpow.pop %v120
    %vm122 = vcmp.ge.f32.partialorder %v115, 0.0
    %v123 = vsel %vm122, 1.0, %v121
    %v124 = vadd.f32 %v121, 1.0
    %v125 = vrcp.pop %v124
    %v126 = vmul.f32 %v123, %v125
    %vm127 = vcmask 25600
    %128 = vst.msk [vmem:[#allocation7] sm:$0x3] %vm127, %v126
    // Predicated region
    $region22: #{tpu_custom_call.1} parent=1 // pred_check
      _
    $region23: #{tpu_custom_call.1} parent=1 // pred_check_branch
      %130 = sbr.rel (0) target = $region25
    $region24: #{tpu_custom_call.1} parent=1 // pred_region
      %s132 = ssub.s32 32, 32
      %133 = vsyncadd [#allocation4], %s132
      %s135 = sshll.u32 [#allocation7], 4
      %s136 = int_to_ptr.vmem [resolvable:$true] %s135
      %138 = dma.vmem_to_hbm [thread:$0]  %s136, 32, %s3, [#allocation4]
    $region25: #{tpu_custom_call.1} parent=1 // pred_fallthru
      _
    // Predicated region
    $region26: #{tpu_custom_call.1} parent=1 // pred_check
      _
    $region27: #{tpu_custom_call.1} parent=1 // pred_check_branch
      %140 = sbr.rel (0) target = $region29
    $region28: #{tpu_custom_call.1} parent=1 // pred_region
      %141 = dma.done [#allocation4], 32
    $region29: #{tpu_custom_call.1} parent=1 // pred_fallthru
      _
    %142 = vsyncpa [#allocation3], 1
    %143 = vsyncpa [#allocation6], 1
    %144 = vsyncpa [#allocation4], 1

</llo_original>
